<compile_context>
chip_gen: v7x
topology: tpu7x:2x2x1
jax: 0.10.0
libtpu: 0.0.40
codegen_flags: <defaults>
</compile_context>

<pallas_src>
import jax
import jax.numpy as jnp
from jax.experimental import pallas as pl
from jax.experimental.pallas import tpu as pltpu

# TODO(synk): max_action comes from env.action_space.high[0] in the original
# script; the RlGame environment is unavailable here, so it is hard-coded.
MAX_ACTION = 2.0

H1 = 50         # true hidden widths of the PyTorch module
H2 = 20
IN_PAD = 128    # lane-dense padded widths (multiples of 128)
H1_PAD = 128
H2_PAD = 128

MXU_DTYPE = jnp.bfloat16  # matmul-operand dtype (halves x/W DMA, 2x MXU rate)


# ----------------------------- kernel ---------------------------------------
def actor_kernel(x_ref, w1_ref, b1_ref, w2_ref, b2_ref, w3_ref, b3_ref, out_ref):
    # Layer 1: Linear(inp, 50) + ReLU. Padded lanes carry exact zeros.
    # Cast to bf16 right after the activation so the live/spilled [tile_b,128]
    # value is half-width.
    h1 = jnp.dot(x_ref[...], w1_ref[...],
                 preferred_element_type=jnp.float32) + b1_ref[...]
    h1 = jnp.maximum(h1, 0.0).astype(MXU_DTYPE)

    # Layer 2: Linear(50, 20) + sigmoid (exp + approx reciprocal -> EUP slot;
    # exp(-h2) may overflow to +inf for very negative pre-activations, vrcp
    # maps that to 0 which is the correct limit). Padded columns evaluate to
    # sigmoid(0)=0.5 (exact in bf16) but hit zero rows of W3, contributing
    # nothing downstream.
    h2 = jnp.dot(h1, w2_ref[...],
                 preferred_element_type=jnp.float32) + b2_ref[...]
    h2 = pl.reciprocal(1.0 + jnp.exp(-h2), approx=True).astype(MXU_DTYPE)

    # Output layer: Linear(20, outp) -> tanh -> scale. W3 is narrowed to
    # [H2_PAD, outp], so tanh and the store only touch the real output lanes.
    o = jnp.dot(h2, w3_ref[...],
                preferred_element_type=jnp.float32) + b3_ref[...]
    out_ref[...] = (MAX_ACTION * jnp.tanh(o)).astype(out_ref.dtype)


# ----------------------------- wrapper ---------------------------------------
def _pad2d(a, rows, cols):
    return jnp.pad(a, ((0, rows - a.shape[0]), (0, cols - a.shape[1])))


def _round_up(x, m):
    return m * ((x + m - 1) // m)


def prepare_padded_params(params):
    """Zero-pad params to lane-dense widths; weights bf16, biases f32.

    W1: [inp, 50] -> [128, 128]; W2: [50, 20] -> [128, 128];
    W3: [20, outp] -> [128, outp]   (rows padded only; output stays narrow).
    """
    w1, b1, w2, b2, w3, b3 = params
    assert w1.shape[0] <= IN_PAD, "input dim must be <= 128 for this kernel"
    outp = w3.shape[1]
    w1p = _pad2d(w1, IN_PAD, H1_PAD).astype(MXU_DTYPE)
    b1p = _pad2d(b1, 1, H1_PAD).astype(jnp.float32)
    w2p = _pad2d(w2, H1_PAD, H2_PAD).astype(MXU_DTYPE)   # extra rows are zero
    b2p = _pad2d(b2, 1, H2_PAD).astype(jnp.float32)
    w3p = _pad2d(w3, H2_PAD, outp).astype(MXU_DTYPE)     # extra rows are zero
    b3p = b3.astype(jnp.float32)
    return (w1p, b1p, w2p, b2p, w3p, b3p)


def actor_forward(x, padded_params, *, tile_b=1024):
    """Pallas forward. x: [B, inp] float; returns [B, outp] float32."""
    w1, b1, w2, b2, w3, b3 = padded_params
    outp = w3.shape[1]
    B, inp = x.shape

    # Batch tile: multiple of 16 (bf16 sublane packing). For B beyond one
    # tile, size the tile to ~ceil(B/2) so the "parallel" grid has >= 2 steps
    # (both TensorCores on v7x get work); clamp for tiny batches.
    if B <= 16:
        tile_b = 16
    else:
        tile_b = min(tile_b, _round_up(pl.cdiv(B, 2), 16))
    b_pad = tile_b * pl.cdiv(B, tile_b)
    grid = (b_pad // tile_b,)

    xp = x.astype(MXU_DTYPE)
    pad_rows, pad_cols = b_pad - B, IN_PAD - inp
    if pad_rows or pad_cols:
        xp = jnp.pad(xp, ((0, pad_rows), (0, pad_cols)))

    resident = lambda a: pl.BlockSpec(a.shape, lambda i: (0, 0))

    weight_bytes = sum(int(p.size) * p.dtype.itemsize for p in padded_params)
    cost = pl.CostEstimate(
        flops=2 * b_pad * (IN_PAD * H1_PAD + H1_PAD * H2_PAD + H2_PAD * outp),
        transcendentals=b_pad * (H2_PAD + outp),          # sigmoid exp + tanh
        bytes_accessed=int(xp.size) * 2 + weight_bytes + b_pad * outp * 4,
    )

    out = pl.pallas_call(
        actor_kernel,
        out_shape=jax.ShapeDtypeStruct((b_pad, outp), jnp.float32),
        grid=grid,
        in_specs=[
            pl.BlockSpec((tile_b, IN_PAD), lambda i: (i, 0)),  # x: batch-tiled
            resident(w1), resident(b1),
            resident(w2), resident(b2),
            resident(w3), resident(b3),
        ],
        out_specs=pl.BlockSpec((tile_b, outp), lambda i: (i, 0)),
        compiler_params=pltpu.CompilerParams(
            dimension_semantics=("parallel",)),
        cost_estimate=cost,
    )(xp, w1, b1, w2, b2, w3, b3)

    return out if b_pad == B else out[:B]


# ----------------------------- init & reference ------------------------------
def init_params(key, inp, outp):
    """Weights ~ N(0, 0.1) as in the PyTorch __init__; biases use PyTorch's
    default U(-1/sqrt(fan_in), 1/sqrt(fan_in)). Weights stored pre-transposed
    as [in, out]; biases as [1, out]. All unpadded f32."""
    ks = jax.random.split(key, 6)

    def lin(kw, kb, fan_in, fan_out):
        w = 0.1 * jax.random.normal(kw, (fan_in, fan_out), dtype=jnp.float32)
        bound = 1.0 / jnp.sqrt(jnp.float32(fan_in))
        b = jax.random.uniform(kb, (1, fan_out), minval=-bound, maxval=bound,
                               dtype=jnp.float32)
        return w, b

    w1, b1 = lin(ks[0], ks[1], inp, H1)
    w2, b2 = lin(ks[2], ks[3], H1, H2)
    w3, b3 = lin(ks[4], ks[5], H2, outp)
    return (w1, b1, w2, b2, w3, b3)


def reference_forward(x, params):
    """Pure-JAX f32 reference of the PyTorch forward."""
    w1, b1, w2, b2, w3, b3 = params
    h1 = jax.nn.relu(x @ w1 + b1)
    h2 = jax.nn.sigmoid(h1 @ w2 + b2)
    return MAX_ACTION * jnp.tanh(h2 @ w3 + b3)


# ----------------------------- test ------------------------------------------
if __name__ == "__main__":
    key = jax.random.PRNGKey(0)
    k_x, k_x2, k_p = jax.random.split(key, 3)

    inp, outp = 16, 4
    params = init_params(k_p, inp, outp)
    padded = prepare_padded_params(params)

    # Small batch (inference-style call): single grid step.
    batch = 8
    x = jax.random.normal(k_x, (batch, inp), dtype=jnp.float32)
    act = actor_forward(x, padded)
    jax.block_until_ready(act)
    ref = reference_forward(x, params)
    assert act.shape == (batch, outp)
    assert jnp.allclose(act, ref, atol=5e-2, rtol=5e-2), "small-batch mismatch"

    # Larger batch exercising the multi-step parallel batch grid (2 tiles).
    batch2 = 1024
    x2 = jax.random.normal(k_x2, (batch2, inp), dtype=jnp.float32)
    act2 = actor_forward(x2, padded, tile_b=512)
    jax.block_until_ready(act2)
    ref2 = reference_forward(x2, params)
    assert act2.shape == (batch2, outp)
    assert jnp.allclose(act2, ref2, atol=5e-2, rtol=5e-2), "large-batch mismatch"

    print("KERNEL_OK")
</pallas_src>

<mosaic_0001>
module attributes {stable_mosaic.version = 11 : i64} {
  func.func @actor_kernel(%arg0: i32, %arg1: memref<16x128xbf16, #tpu.memory_space<vmem>>, %arg2: memref<128x128xbf16, #tpu.memory_space<vmem>>, %arg3: memref<1x128xf32, #tpu.memory_space<vmem>>, %arg4: memref<128x128xbf16, #tpu.memory_space<vmem>>, %arg5: memref<1x128xf32, #tpu.memory_space<vmem>>, %arg6: memref<128x4xbf16, #tpu.memory_space<vmem>>, %arg7: memref<1x4xf32, #tpu.memory_space<vmem>>, %arg8: memref<16x4xf32, #tpu.memory_space<vmem>>) attributes {dimension_semantics = [#tpu.dimension_semantics<parallel>], iteration_bounds = array<i64: 1>, scalar_prefetch = 0 : i64, scratch_operands = 0 : i64, tpu.core_type = #tpu.core_type<tc>, window_params = [{transform_indices = @transform_0, window_bounds = array<i64: 16, 128>}, {pipeline_mode = #tpu.pipeline_mode<synchronous>, transform_indices = @transform_1, window_bounds = array<i64: 128, 128>}, {pipeline_mode = #tpu.pipeline_mode<synchronous>, transform_indices = @transform_2, window_bounds = array<i64: 1, 128>}, {pipeline_mode = #tpu.pipeline_mode<synchronous>, transform_indices = @transform_3, window_bounds = array<i64: 128, 128>}, {pipeline_mode = #tpu.pipeline_mode<synchronous>, transform_indices = @transform_4, window_bounds = array<i64: 1, 128>}, {pipeline_mode = #tpu.pipeline_mode<synchronous>, transform_indices = @transform_5, window_bounds = array<i64: 128, 4>}, {pipeline_mode = #tpu.pipeline_mode<synchronous>, transform_indices = @transform_6, window_bounds = array<i64: 1, 4>}, {transform_indices = @transform_7, window_bounds = array<i64: 16, 4>}]} {
    %c0 = arith.constant 0 : index
    %c0_0 = arith.constant 0 : index
    %0 = vector.load %arg1[%c0, %c0_0] : memref<16x128xbf16, #tpu.memory_space<vmem>>, vector<16x128xbf16>
    %c0_1 = arith.constant 0 : index
    %c0_2 = arith.constant 0 : index
    %1 = vector.load %arg2[%c0_1, %c0_2] : memref<128x128xbf16, #tpu.memory_space<vmem>>, vector<128x128xbf16>
    %cst = arith.constant dense<0.000000e+00> : vector<16x128xf32>
    %2 = tpu.matmul %0, %1, %cst {dimension_numbers = #tpu.dot_dimension_numbers<[1], [0], [0], [1], [0, 0, 1, 1], [], []>} : vector<16x128xbf16>, vector<128x128xbf16>, vector<16x128xf32> -> vector<16x128xf32>
    %c0_3 = arith.constant 0 : index
    %c0_4 = arith.constant 0 : index
    %3 = vector.load %arg3[%c0_3, %c0_4] : memref<1x128xf32, #tpu.memory_space<vmem>>, vector<1x128xf32>
    %4 = vector.broadcast %3 : vector<1x128xf32> to vector<16x128xf32>
    %5 = arith.addf %2, %4 : vector<16x128xf32>
    %cst_5 = arith.constant 0.000000e+00 : f32
    %6 = vector.broadcast %cst_5 : f32 to vector<16x128xf32>
    %7 = arith.maximumf %5, %6 : vector<16x128xf32>
    %8 = arith.truncf %7 : vector<16x128xf32> to vector<16x128xbf16>
    %c0_6 = arith.constant 0 : index
    %c0_7 = arith.constant 0 : index
    %9 = vector.load %arg4[%c0_6, %c0_7] : memref<128x128xbf16, #tpu.memory_space<vmem>>, vector<128x128xbf16>
    %cst_8 = arith.constant dense<0.000000e+00> : vector<16x128xf32>
    %10 = tpu.matmul %8, %9, %cst_8 {dimension_numbers = #tpu.dot_dimension_numbers<[1], [0], [0], [1], [0, 0, 1, 1], [], []>} : vector<16x128xbf16>, vector<128x128xbf16>, vector<16x128xf32> -> vector<16x128xf32>
    %c0_9 = arith.constant 0 : index
    %c0_10 = arith.constant 0 : index
    %11 = vector.load %arg5[%c0_9, %c0_10] : memref<1x128xf32, #tpu.memory_space<vmem>>, vector<1x128xf32>
    %12 = vector.broadcast %11 : vector<1x128xf32> to vector<16x128xf32>
    %13 = arith.addf %10, %12 : vector<16x128xf32>
    %cst_11 = arith.constant 0.000000e+00 : f32
    %14 = vector.broadcast %cst_11 : f32 to vector<16x128xf32>
    %15 = arith.subf %14, %13 : vector<16x128xf32>
    %16 = math.exp %15 : vector<16x128xf32>
    %cst_12 = arith.constant 1.000000e+00 : f32
    %17 = vector.broadcast %cst_12 : f32 to vector<16x128xf32>
    %18 = arith.addf %17, %16 : vector<16x128xf32>
    %19 = tpu.reciprocal %18 {approx = true} : vector<16x128xf32> -> vector<16x128xf32>
    %20 = arith.truncf %19 : vector<16x128xf32> to vector<16x128xbf16>
    %c0_13 = arith.constant 0 : index
    %c0_14 = arith.constant 0 : index
    %21 = vector.load %arg6[%c0_13, %c0_14] : memref<128x4xbf16, #tpu.memory_space<vmem>>, vector<128x4xbf16>
    %cst_15 = arith.constant dense<0.000000e+00> : vector<16x4xf32>
    %22 = tpu.matmul %20, %21, %cst_15 {dimension_numbers = #tpu.dot_dimension_numbers<[1], [0], [0], [1], [0, 0, 1, 1], [], []>} : vector<16x128xbf16>, vector<128x4xbf16>, vector<16x4xf32> -> vector<16x4xf32>
    %c0_16 = arith.constant 0 : index
    %c0_17 = arith.constant 0 : index
    %23 = vector.load %arg7[%c0_16, %c0_17] : memref<1x4xf32, #tpu.memory_space<vmem>>, vector<1x4xf32>
    %24 = vector.broadcast %23 : vector<1x4xf32> to vector<16x4xf32>
    %25 = arith.addf %22, %24 : vector<16x4xf32>
    %26 = math.tanh %25 : vector<16x4xf32>
    %cst_18 = arith.constant 2.000000e+00 : f32
    %27 = vector.broadcast %cst_18 : f32 to vector<16x4xf32>
    %28 = arith.mulf %27, %26 : vector<16x4xf32>
    %c0_19 = arith.constant 0 : index
    %c0_20 = arith.constant 0 : index
    %29 = vector.load %arg8[%c0_19, %c0_20] : memref<16x4xf32, #tpu.memory_space<vmem>>, vector<16x4xf32>
    tpu.vector_store %arg8[%c0_19, %c0_20], %28 {strides = array<i32>} : memref<16x4xf32, #tpu.memory_space<vmem>>, vector<16x4xf32>,
    return
  }
  func.func @transform_0(%arg0: i32) -> (i32, i32) {
    %c0_i32 = arith.constant 0 : i32
    %c0_i32_0 = arith.constant 0 : i32
    return %arg0, %c0_i32 : i32, i32
  }
  func.func @transform_1(%arg0: i32) -> (i32, i32) {
    %c0_i32 = arith.constant 0 : i32
    %c0_i32_0 = arith.constant 0 : i32
    %c0_i32_1 = arith.constant 0 : i32
    return %c0_i32, %c0_i32_0 : i32, i32
  }
  func.func @transform_2(%arg0: i32) -> (i32, i32) {
    %c0_i32 = arith.constant 0 : i32
    %c0_i32_0 = arith.constant 0 : i32
    %c0_i32_1 = arith.constant 0 : i32
    return %c0_i32, %c0_i32_0 : i32, i32
  }
  func.func @transform_3(%arg0: i32) -> (i32, i32) {
    %c0_i32 = arith.constant 0 : i32
    %c0_i32_0 = arith.constant 0 : i32
    %c0_i32_1 = arith.constant 0 : i32
    return %c0_i32, %c0_i32_0 : i32, i32
  }
  func.func @transform_4(%arg0: i32) -> (i32, i32) {
    %c0_i32 = arith.constant 0 : i32
    %c0_i32_0 = arith.constant 0 : i32
    %c0_i32_1 = arith.constant 0 : i32
    return %c0_i32, %c0_i32_0 : i32, i32
  }
  func.func @transform_5(%arg0: i32) -> (i32, i32) {
    %c0_i32 = arith.constant 0 : i32
    %c0_i32_0 = arith.constant 0 : i32
    %c0_i32_1 = arith.constant 0 : i32
    return %c0_i32, %c0_i32_0 : i32, i32
  }
  func.func @transform_6(%arg0: i32) -> (i32, i32) {
    %c0_i32 = arith.constant 0 : i32
    %c0_i32_0 = arith.constant 0 : i32
    %c0_i32_1 = arith.constant 0 : i32
    return %c0_i32, %c0_i32_0 : i32, i32
  }
  func.func @transform_7(%arg0: i32) -> (i32, i32) {
    %c0_i32 = arith.constant 0 : i32
    %c0_i32_0 = arith.constant 0 : i32
    return %arg0, %c0_i32 : i32, i32
  }
}

</mosaic_0001>

<llo_original>
// kernel: tpu_custom_call.1
$region0: #{tpu_custom_call.1}
  #allocation0 [shape = 'u32[]', space=smem, size = 0x4, offset = 0x4, fixed_abs, tag = 'smem constant byte address 0x4 - core index']
  #allocation1 [shape = 'u32[144,128]{1,0:T(1,128)}', space=vmem, size = 0x12000, scoped, tag = 'internal scratch']
  %s0 = inlined_call_operand.hbm [shape: bf16[16,128], index: 0, kind: input, shape index: {}]
  %s1 = inlined_call_operand.vmem [shape: bf16[128,128], index: 1, kind: input, shape index: {}]
  %s2 = inlined_call_operand.vmem [shape: f32[1,128], index: 2, kind: input, shape index: {}]
  %s3 = inlined_call_operand.hbm [shape: bf16[128,128], index: 3, kind: input, shape index: {}]
  %s4 = inlined_call_operand.vmem [shape: f32[1,128], index: 4, kind: input, shape index: {}]
  %s5 = inlined_call_operand.vmem [shape: bf16[128,4], index: 5, kind: input, shape index: {}]
  %s6 = inlined_call_operand.vmem [shape: f32[1,4], index: 6, kind: input, shape index: {}]
  %s7 = inlined_call_operand.vmem [shape: f32[16,4], index: 7, kind: output, shape index: {}]
  %s8 = sld [smem:[#allocation0]]
  $region46: #{tpu_custom_call.1} parent=0
    _
  %s10 = ssub.s32 1, %s8
  %s11 = scalar_select 0, %s10, %s8
  $region1: #{tpu_custom_call.1} parent=0
    #allocation2 [shape = 'u8[4096]{0}', space=vmem, size = 0x1000, scoped, tag = 'input window, operand 0, single buffered']
    #allocation3 [shape = 's32[1]{0}', space=sflag, size = 0x4, scoped, tag = 'scoped memory for tpu_custom_call.1']
    #allocation4 [shape = 'u8[32768]{0}', space=vmem, size = 0x8000, scoped, tag = 'input window, operand 3, single buffered']
    #allocation5 [shape = 's32[1]{0}', space=sflag, size = 0x4, scoped, tag = 'scoped memory for tpu_custom_call.1']
    %12 = vsyncpa [#allocation3], 0
    %13 = vsyncpa [#allocation5], 0
    // Predicated region
    $region2: #{tpu_custom_call.1} parent=1 // pred_check
      _
    $region3: #{tpu_custom_call.1} parent=1 // pred_check_branch
      %15 = sbr.rel (0) target = $region5
    $region4: #{tpu_custom_call.1} parent=1 // pred_region
      %s17 = ssub.s32 128, 128
      %18 = vsyncadd [#allocation3], %s17
      %s19 = sshll.u32 [#allocation2], 4
      %s20 = int_to_ptr.vmem [resolvable:$true] %s19
      %25 = dma.hbm_to_vmem [thread:$0]  %s0, 128, %s20, [#allocation3], 64, 64, 4
    $region5: #{tpu_custom_call.1} parent=1 // pred_fallthru
      _
    // Predicated region
    $region6: #{tpu_custom_call.1} parent=1 // pred_check
      _
    $region7: #{tpu_custom_call.1} parent=1 // pred_check_branch
      %27 = sbr.rel (0) target = $region9
    $region8: #{tpu_custom_call.1} parent=1 // pred_region
      _
    $region9: #{tpu_custom_call.1} parent=1 // pred_fallthru
      _
    // Predicated region
    $region10: #{tpu_custom_call.1} parent=1 // pred_check
      _
    $region11: #{tpu_custom_call.1} parent=1 // pred_check_branch
      %29 = sbr.rel (0) target = $region13
    $region12: #{tpu_custom_call.1} parent=1 // pred_region
      _
    $region13: #{tpu_custom_call.1} parent=1 // pred_fallthru
      _
    // Predicated region
    $region14: #{tpu_custom_call.1} parent=1 // pred_check
      _
    $region15: #{tpu_custom_call.1} parent=1 // pred_check_branch
      %31 = sbr.rel (0) target = $region17
    $region16: #{tpu_custom_call.1} parent=1 // pred_region
      %s33 = ssub.s32 1024, 1024
      %34 = vsyncadd [#allocation5], %s33
      %s35 = sshll.u32 [#allocation4], 4
      %s36 = int_to_ptr.vmem [resolvable:$true] %s35
      %41 = dma.hbm_to_vmem [thread:$0]  %s3, 1024, %s36, [#allocation5], 64, 64, 4
    $region17: #{tpu_custom_call.1} parent=1 // pred_fallthru
      _
    // Predicated region
    $region18: #{tpu_custom_call.1} parent=1 // pred_check
      _
    $region19: #{tpu_custom_call.1} parent=1 // pred_check_branch
      %43 = sbr.rel (0) target = $region21
    $region20: #{tpu_custom_call.1} parent=1 // pred_region
      _
    $region21: #{tpu_custom_call.1} parent=1 // pred_fallthru
      _
    // Predicated region
    $region22: #{tpu_custom_call.1} parent=1 // pred_check
      _
    $region23: #{tpu_custom_call.1} parent=1 // pred_check_branch
      %45 = sbr.rel (0) target = $region25
    $region24: #{tpu_custom_call.1} parent=1 // pred_region
      _
    $region25: #{tpu_custom_call.1} parent=1 // pred_fallthru
      _
    // Predicated region
    $region26: #{tpu_custom_call.1} parent=1 // pred_check
      _
    $region27: #{tpu_custom_call.1} parent=1 // pred_check_branch
      %47 = sbr.rel (0) target = $region29
    $region28: #{tpu_custom_call.1} parent=1 // pred_region
      _
    $region29: #{tpu_custom_call.1} parent=1 // pred_fallthru
      _
    // Predicated region
    $region30: #{tpu_custom_call.1} parent=1 // pred_check
      _
    $region31: #{tpu_custom_call.1} parent=1 // pred_check_branch
      %49 = sbr.rel (0) target = $region33
    $region32: #{tpu_custom_call.1} parent=1 // pred_region
      %50 = dma.done [#allocation3], 128
    $region33: #{tpu_custom_call.1} parent=1 // pred_fallthru
      _
    // Predicated region
    $region34: #{tpu_custom_call.1} parent=1 // pred_check
      _
    $region35: #{tpu_custom_call.1} parent=1 // pred_check_branch
      %52 = sbr.rel (0) target = $region37
    $region36: #{tpu_custom_call.1} parent=1 // pred_region
      %53 = dma.done [#allocation5], 1024
    $region37: #{tpu_custom_call.1} parent=1 // pred_fallthru
      _
    %v55 = vld [vmem:[#allocation2] sm:$0xf]
    %v56 = vld [vmem:[#allocation2 + $0x4] sm:$0xf]
    %v57 = vld [vmem:[%s1] sm:$0xf]
    %v58 = vld [vmem:[%s1 + $0x4] sm:$0xf]
    %v59 = vld [vmem:[%s1 + $0x8] sm:$0xf]
    %v60 = vld [vmem:[%s1 + $0xc] sm:$0xf]
    %v61 = vld [vmem:[%s1 + $0x10] sm:$0xf]
    %v62 = vld [vmem:[%s1 + $0x14] sm:$0xf]
    %v63 = vld [vmem:[%s1 + $0x18] sm:$0xf]
    %v64 = vld [vmem:[%s1 + $0x1c] sm:$0xf]
    %v65 = vld [vmem:[%s1 + $0x20] sm:$0xf]
    %v66 = vld [vmem:[%s1 + $0x24] sm:$0xf]
    %v67 = vld [vmem:[%s1 + $0x28] sm:$0xf]
    %v68 = vld [vmem:[%s1 + $0x2c] sm:$0xf]
    %v69 = vld [vmem:[%s1 + $0x30] sm:$0xf]
    %v70 = vld [vmem:[%s1 + $0x34] sm:$0xf]
    %v71 = vld [vmem:[%s1 + $0x38] sm:$0xf]
    %v72 = vld [vmem:[%s1 + $0x3c] sm:$0xf]
    %v73 = vld [vmem:[%s2] sm:$0x1]
    %v75 = vlaneseq
    %v76 = vshrl.u32 %v75, 7
    %v77 = vsub.s32 0, %v76
    %v78 = vrot.slane %v73, %v77
    %v82 = vunpack.c.l.b16 %v55
    %v83 = vunpack.c.l.b16 %v56
    %v84 = vpack.c.b16 %v83, %v82
    %v102 = vunpack.c.l.b16 %v57
    %v103 = vunpack.c.l.b16 %v58
    %v104 = vunpack.c.l.b16 %v59
    %v105 = vunpack.c.l.b16 %v60
    %v106 = vunpack.c.l.b16 %v61
    %v107 = vunpack.c.l.b16 %v62
    %v108 = vunpack.c.l.b16 %v63
    %v109 = vunpack.c.l.b16 %v64
    %v110 = vunpack.c.l.b16 %v65
    %v111 = vunpack.c.l.b16 %v66
    %v112 = vunpack.c.l.b16 %v67
    %v113 = vunpack.c.l.b16 %v68
    %v114 = vunpack.c.l.b16 %v69
    %v115 = vunpack.c.l.b16 %v70
    %v116 = vunpack.c.l.b16 %v71
    %v117 = vunpack.c.l.b16 %v72
    %v118 = vpack.c.b16 %v103, %v102
    %v119 = vpack.c.b16 %v105, %v104
    %v120 = vpack.c.b16 %v107, %v106
    %v121 = vpack.c.b16 %v109, %v108
    %v122 = vpack.c.b16 %v111, %v110
    %v123 = vpack.c.b16 %v113, %v112
    %v124 = vpack.c.b16 %v115, %v114
    %v125 = vpack.c.b16 %v117, %v116
    %134 = vmatprep.subr.bf16.mxu0 0
    %135 = vmatpush1.bf16.msra.mxu0 %v118
    %136 = vmatprep.subr.bf16.mxu0 0
    %137 = vmatpush1.bf16.msra.mxu0 %v119
    %138 = vmatprep.subr.bf16.mxu0 0
    %139 = vmatpush1.bf16.msra.mxu0 %v120
    %140 = vmatprep.subr.bf16.mxu0 0
    %141 = vmatpush1.bf16.msra.mxu0 %v121
    %142 = vmatprep.subr.bf16.mxu0 0
    %143 = vmatpush1.bf16.msra.mxu0 %v122
    %144 = vmatprep.subr.bf16.mxu0 0
    %145 = vmatpush1.bf16.msra.mxu0 %v123
    %146 = vmatprep.subr.bf16.mxu0 0
    %147 = vmatpush1.bf16.msra.mxu0 %v124
    %148 = vmatprep.subr.bf16.mxu0 0
    %149 = vmatpush1.bf16.msra.mxu0 %v125
    %150 = vmatprep.subr.bf16.mxu0 0
    %151 = vmatpush1.bf16.msra.mxu0 0
    %152 = vmatprep.subr.bf16.mxu0 0
    %153 = vmatpush1.bf16.msra.mxu0 0
    %154 = vmatprep.subr.bf16.mxu0 0
    %155 = vmatpush1.bf16.msra.mxu0 0
    %156 = vmatprep.subr.bf16.mxu0 0
    %157 = vmatpush1.bf16.msra.mxu0 0
    %158 = vmatprep.subr.bf16.mxu0 0
    %159 = vmatpush1.bf16.msra.mxu0 0
    %160 = vmatprep.subr.bf16.mxu0 0
    %161 = vmatpush1.bf16.msra.mxu0 0
    %162 = vmatprep.subr.bf16.mxu0 0
    %163 = vmatpush1.bf16.msra.mxu0 0
    %164 = vmatprep.subr.bf16.mxu0 0
    %165 = vmatpush1.bf16.msra.mxu0 0
    %166 = vmatprep.mubr.bf16.mxu0 0
    %167 = vmatmul.mubr.bf16.gmra.mrb[0].mxu0 %v84
    %v168 = vpop.f32.mrb[0].mxu0
    %v169 = vadd.f32 %v78, %v168
    %v170 = vpop.f32.mrb[0].mxu0
    %v171 = vpop.f32.mrb[0].mxu0
    %v172 = vadd.f32 %v78, %v171
    %v173 = vpop.f32.mrb[0].mxu0
    %174 = vdwg.mxu0
    %v175 = vmax.f32 %v169, 0.0
    %v176 = vmax.f32 %v172, 0.0
    %v177 = vpack.c.bf16 %v176, %v175
    %v178 = vld [vmem:[#allocation4] sm:$0xf]
    %v179 = vld [vmem:[#allocation4 + $0x4] sm:$0xf]
    %v180 = vld [vmem:[#allocation4 + $0x8] sm:$0xf]
    %v181 = vld [vmem:[#allocation4 + $0xc] sm:$0xf]
    %v182 = vld [vmem:[#allocation4 + $0x10] sm:$0xf]
    %v183 = vld [vmem:[#allocation4 + $0x14] sm:$0xf]
    %v184 = vld [vmem:[#allocation4 + $0x18] sm:$0xf]
    %v185 = vld [vmem:[#allocation4 + $0x1c] sm:$0xf]
    %v186 = vld [vmem:[#allocation4 + $0x20] sm:$0xf]
    %v187 = vld [vmem:[#allocation4 + $0x24] sm:$0xf]
    %v188 = vld [vmem:[#allocation4 + $0x28] sm:$0xf]
    %v189 = vld [vmem:[#allocation4 + $0x2c] sm:$0xf]
    %v190 = vld [vmem:[#allocation4 + $0x30] sm:$0xf]
    %v191 = vld [vmem:[#allocation4 + $0x34] sm:$0xf]
    %v192 = vld [vmem:[#allocation4 + $0x38] sm:$0xf]
    %v193 = vld [vmem:[#allocation4 + $0x3c] sm:$0xf]
    %v194 = vld [vmem:[%s4] sm:$0x1]
    %v196 = vlaneseq
    %v197 = vshrl.u32 %v196, 7
    %v198 = vsub.s32 0, %v197
    %v199 = vrot.slane %v194, %v198
    %v217 = vunpack.c.l.b16 %v178
    %v218 = vunpack.c.l.b16 %v179
    %v219 = vunpack.c.l.b16 %v180
    %v220 = vunpack.c.l.b16 %v181
    %v221 = vunpack.c.l.b16 %v182
    %v222 = vunpack.c.l.b16 %v183
    %v223 = vunpack.c.l.b16 %v184
    %v224 = vunpack.c.l.b16 %v185
    %v225 = vunpack.c.l.b16 %v186
    %v226 = vunpack.c.l.b16 %v187
    %v227 = vunpack.c.l.b16 %v188
    %v228 = vunpack.c.l.b16 %v189
    %v229 = vunpack.c.l.b16 %v190
    %v230 = vunpack.c.l.b16 %v191
    %v231 = vunpack.c.l.b16 %v192
    %v232 = vunpack.c.l.b16 %v193
    %v233 = vpack.c.b16 %v218, %v217
    %v234 = vpack.c.b16 %v220, %v219
    %v235 = vpack.c.b16 %v222, %v221
    %v236 = vpack.c.b16 %v224, %v223
    %v237 = vpack.c.b16 %v226, %v225
    %v238 = vpack.c.b16 %v228, %v227
    %v239 = vpack.c.b16 %v230, %v229
    %v240 = vpack.c.b16 %v232, %v231
    %249 = vmatprep.subr.bf16.mxu0 0
    %250 = vmatpush1.bf16.msra.mxu0 %v233
    %251 = vmatprep.subr.bf16.mxu0 0
    %252 = vmatpush1.bf16.msra.mxu0 %v234
    %253 = vmatprep.subr.bf16.mxu0 0
    %254 = vmatpush1.bf16.msra.mxu0 %v235
    %255 = vmatprep.subr.bf16.mxu0 0
    %256 = vmatpush1.bf16.msra.mxu0 %v236
    %257 = vmatprep.subr.bf16.mxu0 0
    %258 = vmatpush1.bf16.msra.mxu0 %v237
    %259 = vmatprep.subr.bf16.mxu0 0
    %260 = vmatpush1.bf16.msra.mxu0 %v238
    %261 = vmatprep.subr.bf16.mxu0 0
    %262 = vmatpush1.bf16.msra.mxu0 %v239
    %263 = vmatprep.subr.bf16.mxu0 0
    %264 = vmatpush1.bf16.msra.mxu0 %v240
    %265 = vmatprep.subr.bf16.mxu0 0
    %266 = vmatpush1.bf16.msra.mxu0 0
    %267 = vmatprep.subr.bf16.mxu0 0
    %268 = vmatpush1.bf16.msra.mxu0 0
    %269 = vmatprep.subr.bf16.mxu0 0
    %270 = vmatpush1.bf16.msra.mxu0 0
    %271 = vmatprep.subr.bf16.mxu0 0
    %272 = vmatpush1.bf16.msra.mxu0 0
    %273 = vmatprep.subr.bf16.mxu0 0
    %274 = vmatpush1.bf16.msra.mxu0 0
    %275 = vmatprep.subr.bf16.mxu0 0
    %276 = vmatpush1.bf16.msra.mxu0 0
    %277 = vmatprep.subr.bf16.mxu0 0
    %278 = vmatpush1.bf16.msra.mxu0 0
    %279 = vmatprep.subr.bf16.mxu0 0
    %280 = vmatpush1.bf16.msra.mxu0 0
    %281 = vmatprep.mubr.bf16.mxu0 0
    %282 = vmatmul.mubr.bf16.gmra.mrb[0].mxu0 %v177
    %v283 = vpop.f32.mrb[0].mxu0
    %v284 = vadd.f32 %v199, %v283
    %v285 = vpop.f32.mrb[0].mxu0
    %v286 = vpop.f32.mrb[0].mxu0
    %v287 = vadd.f32 %v199, %v286
    %v288 = vpop.f32.mrb[0].mxu0
    %289 = vdwg.mxu0
    %v290 = vsub.f32 0.0, %v284
    %v291 = vsub.f32 0.0, %v287
    %v292 = vmul.f32 %v290, 1.442695
    %v293 = vpow.pop %v292
    %v294 = vmul.f32 %v291, 1.442695
    %v295 = vpow.pop %v294
    %v296 = vadd.f32 %v293, 1.0
    %v297 = vadd.f32 %v295, 1.0
    %v298 = vrcp.pop %v296
    %v299 = vrcp.pop %v297
    %v300 = vpack.c.bf16 %v299, %v298
    %v301 = vld [vmem:[%s5] sm:$0xf]
    %v302 = vld [vmem:[%s5 + $0x4] sm:$0xf]
    %v303 = vld [vmem:[%s5 + $0x8] sm:$0xf]
    %v304 = vld [vmem:[%s5 + $0xc] sm:$0xf]
    %v305 = vld [vmem:[%s5 + $0x10] sm:$0xf]
    %v306 = vld [vmem:[%s5 + $0x14] sm:$0xf]
    %v307 = vld [vmem:[%s5 + $0x18] sm:$0xf]
    %v308 = vld [vmem:[%s5 + $0x1c] sm:$0xf]
    %v309 = vld [vmem:[%s5 + $0x20] sm:$0xf]
    %v310 = vld [vmem:[%s5 + $0x24] sm:$0xf]
    %v311 = vld [vmem:[%s5 + $0x28] sm:$0xf]
    %v312 = vld [vmem:[%s5 + $0x2c] sm:$0xf]
    %v313 = vld [vmem:[%s5 + $0x30] sm:$0xf]
    %v314 = vld [vmem:[%s5 + $0x34] sm:$0xf]
    %v315 = vld [vmem:[%s5 + $0x38] sm:$0xf]
    %v316 = vld [vmem:[%s5 + $0x3c] sm:$0xf]
    %v317 = vld [vmem:[%s6] sm:$0x1]
    %v319 = vlaneseq
    %v320 = vshrl.u32 %v319, 7
    %v321 = vsub.s32 0, %v320
    %v322 = vrot.slane %v317, %v321
    %v340 = vunpack.c.l.b16 %v301
    %v341 = vunpack.c.l.b16 %v302
    %v342 = vunpack.c.l.b16 %v303
    %v343 = vunpack.c.l.b16 %v304
    %v344 = vunpack.c.l.b16 %v305
    %v345 = vunpack.c.l.b16 %v306
    %v346 = vunpack.c.l.b16 %v307
    %v347 = vunpack.c.l.b16 %v308
    %v348 = vunpack.c.l.b16 %v309
    %v349 = vunpack.c.l.b16 %v310
    %v350 = vunpack.c.l.b16 %v311
    %v351 = vunpack.c.l.b16 %v312
    %v352 = vunpack.c.l.b16 %v313
    %v353 = vunpack.c.l.b16 %v314
    %v354 = vunpack.c.l.b16 %v315
    %v355 = vunpack.c.l.b16 %v316
    %v356 = vpack.c.b16 %v341, %v340
    %v357 = vpack.c.b16 %v343, %v342
    %v358 = vpack.c.b16 %v345, %v344
    %v359 = vpack.c.b16 %v347, %v346
    %v360 = vpack.c.b16 %v349, %v348
    %v361 = vpack.c.b16 %v351, %v350
    %v362 = vpack.c.b16 %v353, %v352
    %v363 = vpack.c.b16 %v355, %v354
    %372 = vmatprep.subr.bf16.mxu0 0
    %373 = vmatpush1.bf16.msra.mxu0 %v356
    %374 = vmatprep.subr.bf16.mxu0 0
    %375 = vmatpush1.bf16.msra.mxu0 %v357
    %376 = vmatprep.subr.bf16.mxu0 0
    %377 = vmatpush1.bf16.msra.mxu0 %v358
    %378 = vmatprep.subr.bf16.mxu0 0
    %379 = vmatpush1.bf16.msra.mxu0 %v359
    %380 = vmatprep.subr.bf16.mxu0 0
    %381 = vmatpush1.bf16.msra.mxu0 %v360
    %382 = vmatprep.subr.bf16.mxu0 0
    %383 = vmatpush1.bf16.msra.mxu0 %v361
    %384 = vmatprep.subr.bf16.mxu0 0
    %385 = vmatpush1.bf16.msra.mxu0 %v362
    %386 = vmatprep.subr.bf16.mxu0 0
    %387 = vmatpush1.bf16.msra.mxu0 %v363
    %388 = vmatprep.subr.bf16.mxu0 0
    %389 = vmatpush1.bf16.msra.mxu0 0
    %390 = vmatprep.subr.bf16.mxu0 0
    %391 = vmatpush1.bf16.msra.mxu0 0
    %392 = vmatprep.subr.bf16.mxu0 0
    %393 = vmatpush1.bf16.msra.mxu0 0
    %394 = vmatprep.subr.bf16.mxu0 0
    %395 = vmatpush1.bf16.msra.mxu0 0
    %396 = vmatprep.subr.bf16.mxu0 0
    %397 = vmatpush1.bf16.msra.mxu0 0
    %398 = vmatprep.subr.bf16.mxu0 0
    %399 = vmatpush1.bf16.msra.mxu0 0
    %400 = vmatprep.subr.bf16.mxu0 0
    %401 = vmatpush1.bf16.msra.mxu0 0
    %402 = vmatprep.subr.bf16.mxu0 0
    %403 = vmatpush1.bf16.msra.mxu0 0
    %404 = vmatprep.mubr.bf16.mxu0 0
    %405 = vmatmul.mubr.bf16.gmra.mrb[0].mxu0 %v300
    %v406 = vpop.f32.mrb[0].mxu0
    %v407 = vadd.f32 %v322, %v406
    %v408 = vpop.f32.mrb[0].mxu0
    %v409 = vpop.f32.mrb[0].mxu0
    %v410 = vadd.f32 %v322, %v409
    %v411 = vpop.f32.mrb[0].mxu0
    %412 = vdwg.mxu0
    %v413 = vtanh.pop %v407
    %v414 = vtanh.pop %v410
    %v415 = vmul.f32 %v413, 2.0
    %v416 = vmul.f32 %v414, 2.0
    %vm417 = vcmask 31744
    %418 = vst.msk [vmem:[%s7] sm:$0xff] %vm417, %v415
    %419 = vst.msk [vmem:[%s7 + $0x8] sm:$0xff] %vm417, %v416
    // Predicated region
    $region38: #{tpu_custom_call.1} parent=1 // pred_check
      _
    $region39: #{tpu_custom_call.1} parent=1 // pred_check_branch
      %421 = sbr.rel (0) target = $region41
    $region40: #{tpu_custom_call.1} parent=1 // pred_region
      _
    $region41: #{tpu_custom_call.1} parent=1 // pred_fallthru
      _
    // Predicated region
    $region42: #{tpu_custom_call.1} parent=1 // pred_check
      _
    $region43: #{tpu_custom_call.1} parent=1 // pred_check_branch
      %423 = sbr.rel (0) target = $region45
    $region44: #{tpu_custom_call.1} parent=1 // pred_region
      _
    $region45: #{tpu_custom_call.1} parent=1 // pred_fallthru
      _
    %424 = vsyncpa [#allocation3], 1
    %425 = vsyncpa [#allocation5], 1

</llo_original>
